<compile_context>
chip_gen: v5e
topology: v5e:2x2
jax: 0.10.0
libtpu: 0.0.40
codegen_flags: <defaults>
</compile_context>

<pallas_src>
import jax
import jax.numpy as jnp
from jax.experimental import pallas as pl
from jax.experimental.pallas import tpu as pltpu

MAX_WH = 640.0  # self.max_wh in the PyTorch module


def onnx_ort_kernel(x_ref, out_ref):
    """One (TN, D) box-major tile -> one (6, TN) lane-dense feature-major tile.

    x_ref rows are boxes, columns are [cx, cy, w, h, conf, cls_0 .. cls_{C-1}].
    out_ref rows are [x1+dis, y1+dis, x2+dis, y2+dis, max_score, category_id].
    """
    tn, d = x_ref.shape
    n_cls = d - 5

    # Single HBM read of the tile; upcast in-register (bf16 inputs halve HBM bytes,
    # all compares/tie-breaks below stay in f32).
    x = x_ref[...].astype(jnp.float32)                       # (TN, D)

    # Pad the feature (lane) axis to a multiple of 128 so the transpose below is a
    # fully aligned XLU vxpose; the padded rows are never read after the flip.
    d_pad = 128 * pl.cdiv(d, 128)
    if d_pad != d:
        x = jnp.concatenate(
            [x, jnp.zeros((tn, d_pad - d), jnp.float32)], axis=1)
    xt = jnp.transpose(x, (1, 0))                            # (d_pad, TN) feature-major

    # cxcywh -> xyxy with 2-row VPU FMAs (no degenerate 4x4 MXU matmul).
    cxcy = xt[0:2, :]                                        # (2, TN): cx, cy
    half = 0.5 * xt[2:4, :]                                  # (2, TN): w/2, h/2
    top = cxcy - half                                        # x1, y1
    bot = cxcy + half                                        # x2, y2
    conf = xt[4:5, :]                                        # (1, TN)

    if n_cls == 1:
        # Reference: scores = conf (not cls * conf) when n_classes == 1.
        max_score = conf
        cat_f = jnp.zeros_like(conf)
    else:
        cls = xt[5:5 + n_cls, :]                             # (C, TN)
        scores = cls * conf                                  # broadcast over sublane rows

        # Fused class max + first-argmax: one running-max / running-block-index pass
        # over 8-class sublane blocks.  Strict '>' keeps the earliest (lowest) class
        # index among ties, matching torch.max first-max semantics.
        # TODO(synk): NaN scores diverge from torch.max (NaNs are never selected here).
        c_pad = 8 * pl.cdiv(n_cls, 8)
        if c_pad != n_cls:
            scores = jnp.concatenate(
                [scores, jnp.full((c_pad - n_cls, tn), -jnp.inf, jnp.float32)],
                axis=0)
        row = jax.lax.broadcasted_iota(jnp.int32, (8, tn), 0)
        run_max = jnp.full((8, tn), -jnp.inf, jnp.float32)
        run_blk = jnp.zeros((8, tn), jnp.int32)
        for k in range(c_pad // 8):                          # static unrolled loop
            blk = scores[8 * k:8 * k + 8, :]
            take = blk > run_max
            run_max = jnp.where(take, blk, run_max)
            run_blk = jnp.where(take, k, run_blk)
        run_idx = run_blk * 8 + row                          # class index per residue row

        max_score = jnp.max(run_max, axis=0, keepdims=True)  # (1, TN)
        cat = jnp.min(jnp.where(run_max == max_score, run_idx, jnp.int32(c_pad)),
                      axis=0, keepdims=True)                 # (1, TN) first-max index
        cat_f = cat.astype(jnp.float32)                      # exact for any real class count

    dis = cat_f * MAX_WH                                     # (1, TN)
    nmsbox = jnp.concatenate([top, bot], axis=0) + dis       # (4, TN), dis added once

    # One merged lane-dense store: [nmsbox(4), max_score(1), category_id(1)].
    out_ref[...] = jnp.concatenate([nmsbox, max_score, cat_f], axis=0)


def onnx_ort_forward(x, num_det=8, seed=0, tn=2048, vmem_limit_bytes=None):
    """Full ONNX_ORT.forward on the module's native (B, N, 5+C) layout.

    Returns the (num_det, 7) detections tensor [batch, x1, y1, x2, y2, cls, score].
    """
    B, N, D = x.shape
    n_cls = D - 5
    assert n_cls >= 1

    # N-tile selection: multiples of 128, as big as fits comfortably (default 2048
    # keeps v5e's 16 MiB scoped-VMEM default safe; 4096 is fine on v6e/v7x).
    tn = max(128, (int(tn) // 128) * 128)
    tn = min(tn, 128 * pl.cdiv(N, 128))
    if B == 1 and N > 128:
        # Keep >= 2 N-tiles so both v7x TensorCores get parallel grid points.
        tn = min(tn, 128 * pl.cdiv(pl.cdiv(N, 2), 128))
    n_tiles = pl.cdiv(N, tn)

    compiler_params = pltpu.CompilerParams(
        dimension_semantics=("parallel", "parallel"),
        vmem_limit_bytes=vmem_limit_bytes)

    # Single merged output (B, 6, N): rows [x1+dis, y1+dis, x2+dis, y2+dis,
    # max_score, category_id].  Partial edge tiles are masked on store; their
    # garbage lanes are never gathered below (Y < N invariant).
    out = pl.pallas_call(
        onnx_ort_kernel,
        grid=(n_tiles, B),            # N-tiles first so megacore shards even at tiny B
        in_specs=[pl.BlockSpec((None, tn, D), lambda n, b: (b, n, 0))],
        out_specs=pl.BlockSpec((None, 6, tn), lambda n, b: (b, 0, n)),
        out_shape=jax.ShapeDtypeStruct((B, 6, N), jnp.float32),
        compiler_params=compiler_params,
    )(x)

    # --- ORT_NMS placeholder (the reference op uses host random.randint; it exists
    #     only for ONNX symbolic export).  Emulated deterministically here. ---
    # TODO(synk): ORT_NMS is a fake op for ONNX export; num_det fixed instead of random.
    assert N >= 100 + num_det, "placeholder idxs (100..100+num_det) must be in range"
    key = jax.random.PRNGKey(seed)
    X = jnp.sort(jax.random.randint(key, (num_det,), 0, B))      # "batches"
    Y = jnp.arange(100, 100 + num_det, dtype=jnp.int32)          # "idxs"

    # Gather + concat tail (plain JAX, matches the PyTorch tail of forward).
    sel = out[X, :, Y]                                           # (num_det, 6)
    sel_cat = sel[:, 5:6]                                        # category_id as f32
    sel_score = sel[:, 4:5]
    # boxes_xyxy was never written back to HBM; reconstruct the selected rows.
    sel_boxes = sel[:, 0:4] - sel_cat * MAX_WH                   # (num_det, 4)
    Xf = X[:, None].astype(jnp.float32)

    return jnp.concatenate([Xf, sel_boxes, sel_cat, sel_score], axis=1)  # (num_det, 7)


if __name__ == "__main__":
    B, N, C = 2, 256, 80            # batch, num_boxes, n_classes (small demo shapes)
    D = 5 + C                       # cx, cy, w, h, conf, class scores

    key = jax.random.PRNGKey(0)
    x = jax.random.uniform(key, (B, N, D), dtype=jnp.float32)

    out = onnx_ort_forward(x, num_det=8, seed=0, tn=2048)
    jax.block_until_ready(out)
    assert out.shape == (8, 7)
    print("KERNEL_OK")
</pallas_src>

<mosaic_0001>
module attributes {stable_mosaic.version = 11 : i64} {
  func.func @onnx_ort_kernel(%arg0: i32, %arg1: i32, %arg2: memref<1x256x85xf32, #tpu.memory_space<vmem>>, %arg3: memref<1x6x256xf32, #tpu.memory_space<vmem>>) attributes {dimension_semantics = [#tpu.dimension_semantics<parallel>, #tpu.dimension_semantics<parallel>], iteration_bounds = array<i64: 1, 2>, scalar_prefetch = 0 : i64, scratch_operands = 0 : i64, tpu.core_type = #tpu.core_type<tc>, window_params = [{transform_indices = @transform_0, window_bounds = array<i64: 1, 256, 85>}, {transform_indices = @transform_1, window_bounds = array<i64: 1, 6, 256>}]} {
    %c0 = arith.constant 0 : index
    %c0_0 = arith.constant 0 : index
    %c0_1 = arith.constant 0 : index
    %0 = vector.load %arg2[%c0, %c0_0, %c0_1] : memref<1x256x85xf32, #tpu.memory_space<vmem>>, vector<1x256x85xf32>
    %1 = vector.shape_cast %0 : vector<1x256x85xf32> to vector<256x85xf32>
    %cst = arith.constant 0.000000e+00 : f32
    %2 = vector.broadcast %cst : f32 to vector<256x43xf32>
    %3 = tpu.concatenate %1, %2 in 1 : vector<256x85xf32>, vector<256x43xf32> -> vector<256x128xf32>
    %4 = tpu.transpose %3, [1, 0] : vector<256x128xf32> -> vector<128x256xf32>
    %5 = vector.extract_strided_slice %4 {offsets = [0, 0], sizes = [2, 256], strides = [1, 1]} : vector<128x256xf32> to vector<2x256xf32>
    %6 = vector.extract_strided_slice %4 {offsets = [2, 0], sizes = [2, 256], strides = [1, 1]} : vector<128x256xf32> to vector<2x256xf32>
    %cst_2 = arith.constant 5.000000e-01 : f32
    %7 = vector.broadcast %cst_2 : f32 to vector<2x256xf32>
    %8 = arith.mulf %7, %6 : vector<2x256xf32>
    %9 = arith.subf %5, %8 : vector<2x256xf32>
    %10 = arith.addf %5, %8 : vector<2x256xf32>
    %11 = vector.extract_strided_slice %4 {offsets = [4, 0], sizes = [1, 256], strides = [1, 1]} : vector<128x256xf32> to vector<1x256xf32>
    %12 = vector.extract_strided_slice %4 {offsets = [5, 0], sizes = [80, 256], strides = [1, 1]} : vector<128x256xf32> to vector<80x256xf32>
    %13 = vector.broadcast %11 : vector<1x256xf32> to vector<80x256xf32>
    %14 = arith.mulf %12, %13 : vector<80x256xf32>
    %15 = tpu.iota {dimensions = array<i32: 0>} : vector<8x256xi32>
    %cst_3 = arith.constant 0xFF800000 : f32
    %16 = vector.broadcast %cst_3 : f32 to vector<8x256xf32>
    %c0_i32 = arith.constant 0 : i32
    %17 = vector.broadcast %c0_i32 : i32 to vector<8x256xi32>
    %18 = vector.extract_strided_slice %14 {offsets = [0, 0], sizes = [8, 256], strides = [1, 1]} : vector<80x256xf32> to vector<8x256xf32>
    %19 = arith.cmpf ogt, %18, %16 : vector<8x256xf32>
    %20 = arith.select %19, %18, %16 : vector<8x256xi1>, vector<8x256xf32>
    %c0_i32_4 = arith.constant 0 : i32
    %21 = vector.broadcast %c0_i32_4 : i32 to vector<8x256xi32>
    %22 = arith.select %19, %21, %17 : vector<8x256xi1>, vector<8x256xi32>
    %23 = vector.extract_strided_slice %14 {offsets = [8, 0], sizes = [8, 256], strides = [1, 1]} : vector<80x256xf32> to vector<8x256xf32>
    %24 = arith.cmpf ogt, %23, %20 : vector<8x256xf32>
    %25 = arith.select %24, %23, %20 : vector<8x256xi1>, vector<8x256xf32>
    %c1_i32 = arith.constant 1 : i32
    %26 = vector.broadcast %c1_i32 : i32 to vector<8x256xi32>
    %27 = arith.select %24, %26, %22 : vector<8x256xi1>, vector<8x256xi32>
    %28 = vector.extract_strided_slice %14 {offsets = [16, 0], sizes = [8, 256], strides = [1, 1]} : vector<80x256xf32> to vector<8x256xf32>
    %29 = arith.cmpf ogt, %28, %25 : vector<8x256xf32>
    %30 = arith.select %29, %28, %25 : vector<8x256xi1>, vector<8x256xf32>
    %c2_i32 = arith.constant 2 : i32
    %31 = vector.broadcast %c2_i32 : i32 to vector<8x256xi32>
    %32 = arith.select %29, %31, %27 : vector<8x256xi1>, vector<8x256xi32>
    %33 = vector.extract_strided_slice %14 {offsets = [24, 0], sizes = [8, 256], strides = [1, 1]} : vector<80x256xf32> to vector<8x256xf32>
    %34 = arith.cmpf ogt, %33, %30 : vector<8x256xf32>
    %35 = arith.select %34, %33, %30 : vector<8x256xi1>, vector<8x256xf32>
    %c3_i32 = arith.constant 3 : i32
    %36 = vector.broadcast %c3_i32 : i32 to vector<8x256xi32>
    %37 = arith.select %34, %36, %32 : vector<8x256xi1>, vector<8x256xi32>
    %38 = vector.extract_strided_slice %14 {offsets = [32, 0], sizes = [8, 256], strides = [1, 1]} : vector<80x256xf32> to vector<8x256xf32>
    %39 = arith.cmpf ogt, %38, %35 : vector<8x256xf32>
    %40 = arith.select %39, %38, %35 : vector<8x256xi1>, vector<8x256xf32>
    %c4_i32 = arith.constant 4 : i32
    %41 = vector.broadcast %c4_i32 : i32 to vector<8x256xi32>
    %42 = arith.select %39, %41, %37 : vector<8x256xi1>, vector<8x256xi32>
    %43 = vector.extract_strided_slice %14 {offsets = [40, 0], sizes = [8, 256], strides = [1, 1]} : vector<80x256xf32> to vector<8x256xf32>
    %44 = arith.cmpf ogt, %43, %40 : vector<8x256xf32>
    %45 = arith.select %44, %43, %40 : vector<8x256xi1>, vector<8x256xf32>
    %c5_i32 = arith.constant 5 : i32
    %46 = vector.broadcast %c5_i32 : i32 to vector<8x256xi32>
    %47 = arith.select %44, %46, %42 : vector<8x256xi1>, vector<8x256xi32>
    %48 = vector.extract_strided_slice %14 {offsets = [48, 0], sizes = [8, 256], strides = [1, 1]} : vector<80x256xf32> to vector<8x256xf32>
    %49 = arith.cmpf ogt, %48, %45 : vector<8x256xf32>
    %50 = arith.select %49, %48, %45 : vector<8x256xi1>, vector<8x256xf32>
    %c6_i32 = arith.constant 6 : i32
    %51 = vector.broadcast %c6_i32 : i32 to vector<8x256xi32>
    %52 = arith.select %49, %51, %47 : vector<8x256xi1>, vector<8x256xi32>
    %53 = vector.extract_strided_slice %14 {offsets = [56, 0], sizes = [8, 256], strides = [1, 1]} : vector<80x256xf32> to vector<8x256xf32>
    %54 = arith.cmpf ogt, %53, %50 : vector<8x256xf32>
    %55 = arith.select %54, %53, %50 : vector<8x256xi1>, vector<8x256xf32>
    %c7_i32 = arith.constant 7 : i32
    %56 = vector.broadcast %c7_i32 : i32 to vector<8x256xi32>
    %57 = arith.select %54, %56, %52 : vector<8x256xi1>, vector<8x256xi32>
    %58 = vector.extract_strided_slice %14 {offsets = [64, 0], sizes = [8, 256], strides = [1, 1]} : vector<80x256xf32> to vector<8x256xf32>
    %59 = arith.cmpf ogt, %58, %55 : vector<8x256xf32>
    %60 = arith.select %59, %58, %55 : vector<8x256xi1>, vector<8x256xf32>
    %c8_i32 = arith.constant 8 : i32
    %61 = vector.broadcast %c8_i32 : i32 to vector<8x256xi32>
    %62 = arith.select %59, %61, %57 : vector<8x256xi1>, vector<8x256xi32>
    %63 = vector.extract_strided_slice %14 {offsets = [72, 0], sizes = [8, 256], strides = [1, 1]} : vector<80x256xf32> to vector<8x256xf32>
    %64 = arith.cmpf ogt, %63, %60 : vector<8x256xf32>
    %65 = arith.select %64, %63, %60 : vector<8x256xi1>, vector<8x256xf32>
    %c9_i32 = arith.constant 9 : i32
    %66 = vector.broadcast %c9_i32 : i32 to vector<8x256xi32>
    %67 = arith.select %64, %66, %62 : vector<8x256xi1>, vector<8x256xi32>
    %c8_i32_5 = arith.constant 8 : i32
    %68 = vector.broadcast %c8_i32_5 : i32 to vector<8x256xi32>
    %69 = arith.muli %67, %68 : vector<8x256xi32>
    %70 = arith.addi %69, %15 : vector<8x256xi32>
    %cst_6 = arith.constant dense<0xFF800000> : vector<256xf32>
    %71 = vector.multi_reduction <maximumf>, %65, %cst_6 [0] : vector<8x256xf32> to vector<256xf32>
    %72 = vector.shape_cast %71 : vector<256xf32> to vector<1x256xf32>
    %73 = vector.broadcast %72 : vector<1x256xf32> to vector<8x256xf32>
    %74 = arith.cmpf oeq, %65, %73 : vector<8x256xf32>
    %c80_i32 = arith.constant 80 : i32
    %75 = vector.broadcast %c80_i32 : i32 to vector<8x256xi32>
    %76 = arith.select %74, %70, %75 : vector<8x256xi1>, vector<8x256xi32>
    %cst_7 = arith.constant dense<2147483647> : vector<256xi32>
    %77 = vector.multi_reduction <minsi>, %76, %cst_7 [0] : vector<8x256xi32> to vector<256xi32>
    %78 = vector.shape_cast %77 : vector<256xi32> to vector<1x256xi32>
    %79 = arith.sitofp %78 : vector<1x256xi32> to vector<1x256xf32>
    %cst_8 = arith.constant 6.400000e+02 : f32
    %80 = vector.broadcast %cst_8 : f32 to vector<1x256xf32>
    %81 = arith.mulf %79, %80 : vector<1x256xf32>
    %82 = tpu.concatenate %9, %10 in 0 : vector<2x256xf32>, vector<2x256xf32> -> vector<4x256xf32>
    %83 = vector.broadcast %81 : vector<1x256xf32> to vector<4x256xf32>
    %84 = arith.addf %82, %83 : vector<4x256xf32>
    %85 = tpu.concatenate %84, %72, %79 in 0 : vector<4x256xf32>, vector<1x256xf32>, vector<1x256xf32> -> vector<6x256xf32>
    %c0_9 = arith.constant 0 : index
    %c0_10 = arith.constant 0 : index
    %c0_11 = arith.constant 0 : index
    %86 = vector.load %arg3[%c0_9, %c0_10, %c0_11] : memref<1x6x256xf32, #tpu.memory_space<vmem>>, vector<1x6x256xf32>
    %87 = vector.shape_cast %86 : vector<1x6x256xf32> to vector<6x256xf32>
    %88 = vector.shape_cast %85 : vector<6x256xf32> to vector<1x6x256xf32>
    tpu.vector_store %arg3[%c0_9, %c0_10, %c0_11], %88 {strides = array<i32>} : memref<1x6x256xf32, #tpu.memory_space<vmem>>, vector<1x6x256xf32>,
    return
  }
  func.func @transform_0(%arg0: i32, %arg1: i32) -> (i32, i32, i32) {
    %c0_i32 = arith.constant 0 : i32
    %c0_i32_0 = arith.constant 0 : i32
    return %arg1, %arg0, %c0_i32 : i32, i32, i32
  }
  func.func @transform_1(%arg0: i32, %arg1: i32) -> (i32, i32, i32) {
    %c0_i32 = arith.constant 0 : i32
    %c0_i32_0 = arith.constant 0 : i32
    return %arg1, %c0_i32, %arg0 : i32, i32, i32
  }
}

</mosaic_0001>

<llo_original>
// kernel: tpu_custom_call.1
$region0: #{tpu_custom_call.1}
  #allocation0 [shape = 'u32[]', space=smem, size = 0x4, offset = 0x4, fixed_abs, tag = 'smem constant byte address 0x4 - core index']
  #allocation1 [shape = 'u32[72,128]{1,0:T(1,128)}', space=vmem, size = 0x9000, scoped, tag = 'internal scratch']
  %s0 = inlined_call_operand.vmem [shape: f32[2,256,85], index: 0, kind: input, shape index: {}]
  %s1 = inlined_call_operand.vmem [shape: f32[2,6,256], index: 1, kind: output, shape index: {}]
  %s2 = sld [smem:[#allocation0]]
  $region37: #{tpu_custom_call.1} parent=0
    _
  %s4 = ssub.s32 1, %s2
  %s5 = scalar_select 0, %s4, %s2
  loop: start=0, step=1, limit=4
  $region2: #{tpu_custom_call.1} parent=0 // loop_pre_header
    _
  $region3: #{tpu_custom_call.1} parent=0 // loop_header
    %s7 = sphi 0, %s11
    %p8 = scmp.ge.s32.totalorder %s7, 4
    %s14 = sphi 0, %s26
    %s15 = sphi 0, %s22
    %s16 = sphi 0, %s14
    %s17 = sphi 0, %s15
    %s18 = sphi 0, %s16
    %s19 = sphi 0, %s17
    %s31 = sphi 0, %s33
    %s34 = sphi 0, %s31
    %s35 = sphi 0, %s34
    %s51 = sphi 0, %s35
    %s59 = sphi 0, %s61
    %s62 = sphi 0, %s59
    %s63 = sphi 0, %s62
    %s79 = sphi 0, %s63
  $region4: #{tpu_custom_call.1} parent=0 // loop_header_branch
    %10 = sbr.rel (%p8) target = $region8
  $region5: #{tpu_custom_call.1} parent=0 // loop_body
    %s12 = ssub.s32 %s7, 1
    %s13 = ssub.s32 %s7, 2
    %s20 = sadd.s32 1, %s15
    %p21 = scmp.ge.s32.totalorder %s20, 2
    %s22 = scalar_select %p21, 0, %s20
    %s23 = sadd.s32 1, %s14
    %s24 = scalar_select %p21, %s23, %s14
    %p25 = scmp.ge.s32.totalorder %s24, 1
    %s26 = scalar_select %p25, 0, %s24
    %s27 = ssub.s32 %s15, %s22
    %s28 = ssub.s32 %s14, %s26
    %s29 = sor.u32 %s27, %s28
    %p30 = scmp.eq.s32.totalorder %s29, 0
    %s32 = sadd.s32 %s31, 1
    %s33 = scalar_select %p30, %s31, %s32
    %p36 = pneg %p30
    %p37 = scmp.eq.s32.totalorder %s7, 1
    %p38 = por %p36, %p37
    %p39 = scmp.ne.s32.totalorder %s31, %s34
    %p40 = scmp.eq.s32.totalorder %s7, 0
    %p41 = por %p39, %p40
    %p42 = scmp.ne.s32.totalorder %s31, %s34
    %p43 = scmp.eq.s32.totalorder %s12, 1
    %p44 = por %p42, %p43
    %p45 = scmp.ne.s32.totalorder %s34, %s35
    %p46 = scmp.eq.s32.totalorder %s12, 0
    %p47 = por %p45, %p46
    %p48 = scmp.ne.s32.totalorder %s34, %s35
    %p49 = scmp.eq.s32.totalorder %s13, 1
    %p50 = por %p48, %p49
    %p52 = scmp.ne.s32.totalorder %s35, %s51
    %p53 = scmp.eq.s32.totalorder %s13, 0
    %p54 = por %p52, %p53
    %s55 = ssub.s32 %s15, %s22
    %s56 = ssub.s32 %s14, %s26
    %s57 = sor.u32 %s55, %s56
    %p58 = scmp.eq.s32.totalorder %s57, 0
    %s60 = sadd.s32 %s59, 1
    %s61 = scalar_select %p58, %s59, %s60
    %p64 = pneg %p58
    %p65 = scmp.eq.s32.totalorder %s7, 1
    %p66 = por %p64, %p65
    %p67 = scmp.ne.s32.totalorder %s59, %s62
    %p68 = scmp.eq.s32.totalorder %s7, 0
    %p69 = por %p67, %p68
    %p70 = scmp.ne.s32.totalorder %s59, %s62
    %p71 = scmp.eq.s32.totalorder %s12, 1
    %p72 = por %p70, %p71
    %p73 = scmp.ne.s32.totalorder %s62, %s63
    %p74 = scmp.eq.s32.totalorder %s12, 0
    %p75 = por %p73, %p74
    %p76 = scmp.ne.s32.totalorder %s62, %s63
    %p77 = scmp.eq.s32.totalorder %s13, 1
    %p78 = por %p76, %p77
    %p80 = scmp.ne.s32.totalorder %s63, %s79
    %p81 = scmp.eq.s32.totalorder %s13, 0
    %p82 = por %p80, %p81
    %p83 = scmp.le.s32.totalorder 1, %s7
    %p84 = scmp.lt.s32.totalorder %s7, 3
    %p85 = pnand %p83, %p84
    %p86 = pneg %p85
    // Predicated region
    $region9: #{tpu_custom_call.1} parent=5 // pred_check
      _
    $region10: #{tpu_custom_call.1} parent=5 // pred_check_branch
      %88 = sbr.rel (%p85) target = $region12
    $region11: #{tpu_custom_call.1} parent=5 // pred_region
      %s89 = ssub.s32 %s7, 1
    $region12: #{tpu_custom_call.1} parent=5 // pred_fallthru
      _
    %p90 = scmp.lt.s32.totalorder %s7, 2
    // Predicated region
    $region13: #{tpu_custom_call.1} parent=5 // pred_check
      %p91 = pneg %p90
    $region14: #{tpu_custom_call.1} parent=5 // pred_check_branch
      %93 = sbr.rel (%p91) target = $region16
    $region15: #{tpu_custom_call.1} parent=5 // pred_region
      // Predicated region
      $region17: #{tpu_custom_call.1} parent=15 // pred_check
        %p94 = pneg %p41
      $region18: #{tpu_custom_call.1} parent=15 // pred_check_branch
        %96 = sbr.rel (%p94) target = $region20
      $region19: #{tpu_custom_call.1} parent=15 // pred_region
        %s97 = smul.u32 32, %s14
        %p98 = scmp.lt.s32.totalorder %s15, 1
        %s99 = scalar_select %p98, %s15, 1
        %p100 = scmp.lt.s32.totalorder %s97, 31
        %s101 = scalar_select %p100, %s97, 31
        %s102 = smul.addr %s99, 32
        %s103 = sadd.s32 %s101, %s102
        %s104 = smul.addr %s103, 8
        %s105 = scalar_lea.vmem %s0, %s104
        %s106 = smul.u32 32, %s14
      $region20: #{tpu_custom_call.1} parent=15 // pred_fallthru
        _
    $region16: #{tpu_custom_call.1} parent=5 // pred_fallthru
      _
    %p107 = scmp.le.s32.totalorder 1, %s7
    %p108 = scmp.lt.s32.totalorder %s7, 3
    %p109 = pnand %p107, %p108
    %p110 = pneg %p109
    // Predicated region
    $region21: #{tpu_custom_call.1} parent=5 // pred_check
      _
    $region22: #{tpu_custom_call.1} parent=5 // pred_check_branch
      %112 = sbr.rel (%p109) target = $region24
    $region23: #{tpu_custom_call.1} parent=5 // pred_region
      %s113 = ssub.s32 %s7, 1
      %s114 = smul.u32 32, %s16
      %p115 = scmp.lt.s32.totalorder %s17, 1
      %s116 = scalar_select %p115, %s17, 1
      %p117 = scmp.lt.s32.totalorder %s114, 31
      %s118 = scalar_select %p117, %s114, 31
      %s119 = smul.addr %s116, 32
      %s120 = sadd.s32 %s118, %s119
      %s121 = smul.addr %s120, 8
      %s122 = scalar_lea.vmem %s0, %s121
      %p123 = pneg %p47
      %p124 = pneg %p44
      %p125 = pneg %p75
      %p126 = pneg %p72
      %s127 = smul.u32 2, %s16
      %p128 = scmp.lt.s32.totalorder %s17, 1
      %s129 = scalar_select %p128, %s17, 1
      %p130 = scmp.lt.s32.totalorder %s127, 1
      %s131 = scalar_select %p130, %s127, 1
      %s132 = smul.addr %s129, 2
      %s133 = sadd.s32 %s131, %s132
      %s134 = smul.addr %s133, 8
      %s135 = scalar_lea.vmem %s1, %s134
      %s136 = smul.u32 32, %s16
      %p137 = scmp.lt.s32.totalorder %s17, 1
      %s138 = scalar_select %p137, %s17, 1
      %p139 = scmp.lt.s32.totalorder %s136, 31
      %s140 = scalar_select %p139, %s136, 31
      %s141 = smul.addr %s138, 32
      %s142 = sadd.s32 %s140, %s141
      %s143 = smul.addr %s142, 8
      %s144 = scalar_lea.vmem %s0, %s143
      %s145 = smul.u32 32, %s16
      %s146 = smul.u32 2, %s16
      %p147 = scmp.lt.s32.totalorder %s17, 1
      %s148 = scalar_select %p147, %s17, 1
      %p149 = scmp.lt.s32.totalorder %s146, 1
      %s150 = scalar_select %p149, %s146, 1
      %s151 = smul.addr %s148, 2
      %s152 = sadd.s32 %s150, %s151
      %s153 = smul.addr %s152, 8
      %s154 = scalar_lea.vmem %s1, %s153
      %s155 = smul.u32 2, %s16
      %v156 = vld [vmem:[%s144] sm:$0xff]
      %v157 = vld [vmem:[%s144 + $0x8] sm:$0xff]
      %v158 = vld [vmem:[%s144 + $0x10] sm:$0xff]
      %v159 = vld [vmem:[%s144 + $0x18] sm:$0xff]
      %v160 = vld [vmem:[%s144 + $0x20] sm:$0xff]
      %v161 = vld [vmem:[%s144 + $0x28] sm:$0xff]
      %v162 = vld [vmem:[%s144 + $0x30] sm:$0xff]
      %v163 = vld [vmem:[%s144 + $0x38] sm:$0xff]
      %v164 = vld [vmem:[%s144 + $0x40] sm:$0xff]
      %v165 = vld [vmem:[%s144 + $0x48] sm:$0xff]
      %v166 = vld [vmem:[%s144 + $0x50] sm:$0xff]
      %v167 = vld [vmem:[%s144 + $0x58] sm:$0xff]
      %v168 = vld [vmem:[%s144 + $0x60] sm:$0xff]
      %v169 = vld [vmem:[%s144 + $0x68] sm:$0xff]
      %v170 = vld [vmem:[%s144 + $0x70] sm:$0xff]
      %v171 = vld [vmem:[%s144 + $0x78] sm:$0xff]
      %v172 = vld [vmem:[%s144 + $0x80] sm:$0xff]
      %v173 = vld [vmem:[%s144 + $0x88] sm:$0xff]
      %v174 = vld [vmem:[%s144 + $0x90] sm:$0xff]
      %v175 = vld [vmem:[%s144 + $0x98] sm:$0xff]
      %v176 = vld [vmem:[%s144 + $0xa0] sm:$0xff]
      %v177 = vld [vmem:[%s144 + $0xa8] sm:$0xff]
      %v178 = vld [vmem:[%s144 + $0xb0] sm:$0xff]
      %v179 = vld [vmem:[%s144 + $0xb8] sm:$0xff]
      %v180 = vld [vmem:[%s144 + $0xc0] sm:$0xff]
      %v181 = vld [vmem:[%s144 + $0xc8] sm:$0xff]
      %v182 = vld [vmem:[%s144 + $0xd0] sm:$0xff]
      %v183 = vld [vmem:[%s144 + $0xd8] sm:$0xff]
      %v184 = vld [vmem:[%s144 + $0xe0] sm:$0xff]
      %v185 = vld [vmem:[%s144 + $0xe8] sm:$0xff]
      %v186 = vld [vmem:[%s144 + $0xf0] sm:$0xff]
      %v187 = vld [vmem:[%s144 + $0xf8] sm:$0xff]
      %vm188 = vcmask 695296
      %v189 = vsel %vm188, %v156, 0.0
      %v190 = vsel %vm188, %v157, 0.0
      %v191 = vsel %vm188, %v158, 0.0
      %v192 = vsel %vm188, %v159, 0.0
      %v193 = vsel %vm188, %v160, 0.0
      %v194 = vsel %vm188, %v161, 0.0
      %v195 = vsel %vm188, %v162, 0.0
      %v196 = vsel %vm188, %v163, 0.0
      %v197 = vsel %vm188, %v164, 0.0
      %v198 = vsel %vm188, %v165, 0.0
      %v199 = vsel %vm188, %v166, 0.0
      %v200 = vsel %vm188, %v167, 0.0
      %v201 = vsel %vm188, %v168, 0.0
      %v202 = vsel %vm188, %v169, 0.0
      %v203 = vsel %vm188, %v170, 0.0
      %v204 = vsel %vm188, %v171, 0.0
      %v205 = vsel %vm188, %v172, 0.0
      %v206 = vsel %vm188, %v173, 0.0
      %v207 = vsel %vm188, %v174, 0.0
      %v208 = vsel %vm188, %v175, 0.0
      %v209 = vsel %vm188, %v176, 0.0
      %v210 = vsel %vm188, %v177, 0.0
      %v211 = vsel %vm188, %v178, 0.0
      %v212 = vsel %vm188, %v179, 0.0
      %v213 = vsel %vm188, %v180, 0.0
      %v214 = vsel %vm188, %v181, 0.0
      %v215 = vsel %vm188, %v182, 0.0
      %v216 = vsel %vm188, %v183, 0.0
      %v217 = vsel %vm188, %v184, 0.0
      %v218 = vsel %vm188, %v185, 0.0
      %v219 = vsel %vm188, %v186, 0.0
      %v220 = vsel %vm188, %v187, 0.0
      %221 = vxpose.xlu0.b32.start [1/16] %v189, 128
      %222 = vxpose.xlu0.b32.cont [2/16] %v190, 128
      %223 = vxpose.xlu0.b32.cont [3/16] %v191, 128
      %224 = vxpose.xlu0.b32.cont [4/16] %v192, 128
      %225 = vxpose.xlu0.b32.cont [5/16] %v193, 128
      %226 = vxpose.xlu0.b32.cont [6/16] %v194, 128
      %227 = vxpose.xlu0.b32.cont [7/16] %v195, 128
      %228 = vxpose.xlu0.b32.cont [8/16] %v196, 128
      %229 = vxpose.xlu0.b32.cont [9/16] %v197, 128
      %230 = vxpose.xlu0.b32.cont [10/16] %v198, 128
      %231 = vxpose.xlu0.b32.cont [11/16] %v199, 128
      %232 = vxpose.xlu0.b32.cont [12/16] %v200, 128
      %233 = vxpose.xlu0.b32.cont [13/16] %v201, 128
      %234 = vxpose.xlu0.b32.cont [14/16] %v202, 128
      %235 = vxpose.xlu0.b32.cont [15/16] %v203, 128
      %236 = vxpose.xlu0.b32.end [16/16] %v204, 128
      %v237 = vpop.trf.xlu0
      %v238 = vpop.trf.xlu0
      %v239 = vpop.trf.xlu0
      %v240 = vpop.trf.xlu0
      %v241 = vpop.trf.xlu0
      %v242 = vpop.trf.xlu0
      %v243 = vpop.trf.xlu0
      %v244 = vpop.trf.xlu0
      %v245 = vpop.trf.xlu0
      %v246 = vpop.trf.xlu0
      %v247 = vpop.trf.xlu0
      %v248 = vpop.trf.xlu0
      %v249 = vpop.trf.xlu0
      %v250 = vpop.trf.xlu0
      %v251 = vpop.trf.xlu0
      %v252 = vpop.trf.xlu0
      %253 = vxpose.xlu0.b32.start [1/16] %v205, 128
      %254 = vxpose.xlu0.b32.cont [2/16] %v206, 128
      %255 = vxpose.xlu0.b32.cont [3/16] %v207, 128
      %256 = vxpose.xlu0.b32.cont [4/16] %v208, 128
      %257 = vxpose.xlu0.b32.cont [5/16] %v209, 128
      %258 = vxpose.xlu0.b32.cont [6/16] %v210, 128
      %259 = vxpose.xlu0.b32.cont [7/16] %v211, 128
      %260 = vxpose.xlu0.b32.cont [8/16] %v212, 128
      %261 = vxpose.xlu0.b32.cont [9/16] %v213, 128
      %262 = vxpose.xlu0.b32.cont [10/16] %v214, 128
      %263 = vxpose.xlu0.b32.cont [11/16] %v215, 128
      %264 = vxpose.xlu0.b32.cont [12/16] %v216, 128
      %265 = vxpose.xlu0.b32.cont [13/16] %v217, 128
      %266 = vxpose.xlu0.b32.cont [14/16] %v218, 128
      %267 = vxpose.xlu0.b32.cont [15/16] %v219, 128
      %268 = vxpose.xlu0.b32.end [16/16] %v220, 128
      %v269 = vpop.trf.xlu0
      %v270 = vpop.trf.xlu0
      %v271 = vpop.trf.xlu0
      %v272 = vpop.trf.xlu0
      %v273 = vpop.trf.xlu0
      %v274 = vpop.trf.xlu0
      %v275 = vpop.trf.xlu0
      %v276 = vpop.trf.xlu0
      %v277 = vpop.trf.xlu0
      %v278 = vpop.trf.xlu0
      %v279 = vpop.trf.xlu0
      %v280 = vpop.trf.xlu0
      %v281 = vpop.trf.xlu0
      %v282 = vpop.trf.xlu0
      %v283 = vpop.trf.xlu0
      %v284 = vpop.trf.xlu0
      %v285 = vmul.f32 %v237, 0.5
      %v286 = vmul.f32 %v269, 0.5
      %v289 = vrot.slane %v285, 2
      %v290 = vrot.slane %v286, 2
      %v293 = vsub.f32 %v237, %v289
      %v294 = vsub.f32 %v269, %v290
      %v295 = vadd.f32 %v237, %v289
      %v296 = vadd.f32 %v269, %v290
      %v297 = vperm.slane %v237, 4
      %v298 = vperm.slane %v269, 4
      %v299 = vmul.f32 %v237, %v297
      %v300 = vmul.f32 %v269, %v298
      %v301 = vmul.f32 %v238, %v297
      %v302 = vmul.f32 %v270, %v298
      %v303 = vmul.f32 %v239, %v297
      %v304 = vmul.f32 %v271, %v298
      %v305 = vmul.f32 %v240, %v297
      %v306 = vmul.f32 %v272, %v298
      %v307 = vmul.f32 %v241, %v297
      %v308 = vmul.f32 %v273, %v298
      %v309 = vmul.f32 %v242, %v297
      %v310 = vmul.f32 %v274, %v298
      %v311 = vmul.f32 %v243, %v297
      %v312 = vmul.f32 %v275, %v298
      %v313 = vmul.f32 %v244, %v297
      %v314 = vmul.f32 %v276, %v298
      %v315 = vmul.f32 %v245, %v297
      %v316 = vmul.f32 %v277, %v298
      %v317 = vmul.f32 %v246, %v297
      %v318 = vmul.f32 %v278, %v298
      %v319 = vmul.f32 %v247, %v297
      %v320 = vmul.f32 %v279, %v298
      %v321 = vlaneseq
      %v322 = vshrl.u32 %v321, 7
      %vm323 = vcmp.gt.f32.partialorder %v299, -inf
      %vm324 = vcmp.gt.f32.partialorder %v300, -inf
      %vm325 = vcmp.gt.f32.partialorder %v301, -inf
      %vm326 = vcmp.gt.f32.partialorder %v302, -inf
      %v327 = vsel %vm323, %v299, -inf
      %v328 = vsel %vm324, %v300, -inf
      %v329 = vsel %vm325, %v301, -inf
      %v330 = vsel %vm326, %v302, -inf
      %vm331 = vcmp.gt.f32.partialorder %v301, %v327
      %vm332 = vcmp.gt.f32.partialorder %v302, %v328
      %vm333 = vcmp.gt.f32.partialorder %v303, %v329
      %vm334 = vcmp.gt.f32.partialorder %v304, %v330
      %v335 = vsel %vm331, %v301, %v327
      %v336 = vsel %vm332, %v302, %v328
      %v337 = vsel %vm333, %v303, %v329
      %v338 = vsel %vm334, %v304, %v330
      %v339 = vsel %vm331, 1, 0
      %v340 = vsel %vm332, 1, 0
      %v341 = vsel %vm333, 1, 0
      %v342 = vsel %vm334, 1, 0
      %vm343 = vcmp.gt.f32.partialorder %v303, %v335
      %vm344 = vcmp.gt.f32.partialorder %v304, %v336
      %vm345 = vcmp.gt.f32.partialorder %v305, %v337
      %vm346 = vcmp.gt.f32.partialorder %v306, %v338
      %v347 = vsel %vm343, %v303, %v335
      %v348 = vsel %vm344, %v304, %v336
      %v349 = vsel %vm345, %v305, %v337
      %v350 = vsel %vm346, %v306, %v338
      %v351 = vsel %vm343, 2, %v339
      %v352 = vsel %vm344, 2, %v340
      %v353 = vsel %vm345, 2, %v341
      %v354 = vsel %vm346, 2, %v342
      %vm355 = vcmp.gt.f32.partialorder %v305, %v347
      %vm356 = vcmp.gt.f32.partialorder %v306, %v348
      %vm357 = vcmp.gt.f32.partialorder %v307, %v349
      %vm358 = vcmp.gt.f32.partialorder %v308, %v350
      %v359 = vsel %vm355, %v305, %v347
      %v360 = vsel %vm356, %v306, %v348
      %v361 = vsel %vm357, %v307, %v349
      %v362 = vsel %vm358, %v308, %v350
      %v363 = vsel %vm355, 3, %v351
      %v364 = vsel %vm356, 3, %v352
      %v365 = vsel %vm357, 3, %v353
      %v366 = vsel %vm358, 3, %v354
      %vm367 = vcmp.gt.f32.partialorder %v307, %v359
      %vm368 = vcmp.gt.f32.partialorder %v308, %v360
      %vm369 = vcmp.gt.f32.partialorder %v309, %v361
      %vm370 = vcmp.gt.f32.partialorder %v310, %v362
      %v371 = vsel %vm367, %v307, %v359
      %v372 = vsel %vm368, %v308, %v360
      %v373 = vsel %vm369, %v309, %v361
      %v374 = vsel %vm370, %v310, %v362
      %v375 = vsel %vm367, 4, %v363
      %v376 = vsel %vm368, 4, %v364
      %v377 = vsel %vm369, 4, %v365
      %v378 = vsel %vm370, 4, %v366
      %vm379 = vcmp.gt.f32.partialorder %v309, %v371
      %vm380 = vcmp.gt.f32.partialorder %v310, %v372
      %vm381 = vcmp.gt.f32.partialorder %v311, %v373
      %vm382 = vcmp.gt.f32.partialorder %v312, %v374
      %v383 = vsel %vm379, %v309, %v371
      %v384 = vsel %vm380, %v310, %v372
      %v385 = vsel %vm381, %v311, %v373
      %v386 = vsel %vm382, %v312, %v374
      %v387 = vsel %vm379, 5, %v375
      %v388 = vsel %vm380, 5, %v376
      %v389 = vsel %vm381, 5, %v377
      %v390 = vsel %vm382, 5, %v378
      %vm391 = vcmp.gt.f32.partialorder %v311, %v383
      %vm392 = vcmp.gt.f32.partialorder %v312, %v384
      %vm393 = vcmp.gt.f32.partialorder %v313, %v385
      %vm394 = vcmp.gt.f32.partialorder %v314, %v386
      %v395 = vsel %vm391, %v311, %v383
      %v396 = vsel %vm392, %v312, %v384
      %v397 = vsel %vm393, %v313, %v385
      %v398 = vsel %vm394, %v314, %v386
      %v399 = vsel %vm391, 6, %v387
      %v400 = vsel %vm392, 6, %v388
      %v401 = vsel %vm393, 6, %v389
      %v402 = vsel %vm394, 6, %v390
      %vm403 = vcmp.gt.f32.partialorder %v313, %v395
      %vm404 = vcmp.gt.f32.partialorder %v314, %v396
      %vm405 = vcmp.gt.f32.partialorder %v315, %v397
      %vm406 = vcmp.gt.f32.partialorder %v316, %v398
      %v407 = vsel %vm403, %v313, %v395
      %v408 = vsel %vm404, %v314, %v396
      %v409 = vsel %vm405, %v315, %v397
      %v410 = vsel %vm406, %v316, %v398
      %v411 = vsel %vm403, 7, %v399
      %v412 = vsel %vm404, 7, %v400
      %v413 = vsel %vm405, 7, %v401
      %v414 = vsel %vm406, 7, %v402
      %vm415 = vcmp.gt.f32.partialorder %v315, %v407
      %vm416 = vcmp.gt.f32.partialorder %v316, %v408
      %vm417 = vcmp.gt.f32.partialorder %v317, %v409
      %vm418 = vcmp.gt.f32.partialorder %v318, %v410
      %v419 = vsel %vm415, %v315, %v407
      %v420 = vsel %vm416, %v316, %v408
      %v421 = vsel %vm417, %v317, %v409
      %v422 = vsel %vm418, %v318, %v410
      %v423 = vsel %vm415, 8, %v411
      %v424 = vsel %vm416, 8, %v412
      %v425 = vsel %vm417, 8, %v413
      %v426 = vsel %vm418, 8, %v414
      %vm427 = vcmp.gt.f32.partialorder %v317, %v419
      %vm428 = vcmp.gt.f32.partialorder %v318, %v420
      %vm429 = vcmp.gt.f32.partialorder %v319, %v421
      %vm430 = vcmp.gt.f32.partialorder %v320, %v422
      %v431 = vsel %vm427, %v317, %v419
      %v432 = vsel %vm428, %v318, %v420
      %v433 = vsel %vm429, %v319, %v421
      %v434 = vsel %vm430, %v320, %v422
      %v435 = vsel %vm427, 9, %v423
      %v436 = vsel %vm428, 9, %v424
      %v437 = vsel %vm429, 9, %v425
      %v438 = vsel %vm430, 9, %v426
      %v439 = vmul.u32 %v435, 8
      %v440 = vmul.u32 %v436, 8
      %v441 = vmul.u32 %v437, 8
      %v442 = vmul.u32 %v438, 8
      %v443 = vrot.slane %v322, 3
      %v444 = vadd.s32 %v439, %v443
      %v445 = vadd.s32 %v440, %v443
      %v446 = vadd.s32 %v441, %v443
      %v447 = vadd.s32 %v442, %v443
      %vm448 = vcmask 1047557
      %v449 = vsel %vm448, %v431, -inf
      %vm450 = vcmask 1044480
      %v451 = vsel %vm450, %v433, -inf
      %v452 = vmax.f32 %v449, %v451
      %v453 = vrot.slane %v452, 4
      %v454 = vmax.f32 %v452, %v453
      %v455 = vrot.slane %v454, 2
      %v456 = vmax.f32 %v454, %v455
      %v457 = vrot.slane %v456, 1
      %v458 = vmax.f32 %v456, %v457
      %v459 = vsel %vm448, %v432, -inf
      %v460 = vsel %vm450, %v434, -inf
      %v461 = vmax.f32 %v459, %v460
      %v462 = vrot.slane %v461, 4
      %v463 = vmax.f32 %v461, %v462
      %v464 = vrot.slane %v463, 2
      %v465 = vmax.f32 %v463, %v464
      %v466 = vrot.slane %v465, 1
      %v467 = vmax.f32 %v465, %v466
      %vm468 = vcmp.eq.f32.partialorder %v431, %v458
      %vm469 = vcmp.eq.f32.partialorder %v432, %v467
      %vm470 = vcmp.eq.f32.partialorder %v433, %v458
      %vm471 = vcmp.eq.f32.partialorder %v434, %v467
      %v472 = vsel %vm468, %v444, 80
      %v473 = vsel %vm469, %v445, 80
      %v474 = vsel %vm470, %v446, 80
      %v475 = vsel %vm471, %v447, 80
      %v476 = vsel %vm448, %v472, 2147483647
      %v477 = vsel %vm450, %v474, 2147483647
      %vm478 = vcmp.lt.s32.totalorder %v476, %v477
      %v479 = vsel %vm478, %v476, %v477
      %v480 = vrot.slane %v479, 4
      %vm481 = vcmp.lt.s32.totalorder %v479, %v480
      %v482 = vsel %vm481, %v479, %v480
      %v483 = vrot.slane %v482, 2
      %vm484 = vcmp.lt.s32.totalorder %v482, %v483
      %v485 = vsel %vm484, %v482, %v483
      %v486 = vrot.slane %v485, 1
      %vm487 = vcmp.lt.s32.totalorder %v485, %v486
      %v488 = vsel %vm487, %v485, %v486
      %v489 = vsel %vm448, %v473, 2147483647
      %v490 = vsel %vm450, %v475, 2147483647
      %vm491 = vcmp.lt.s32.totalorder %v489, %v490
      %v492 = vsel %vm491, %v489, %v490
      %v493 = vrot.slane %v492, 4
      %vm494 = vcmp.lt.s32.totalorder %v492, %v493
      %v495 = vsel %vm494, %v492, %v493
      %v496 = vrot.slane %v495, 2
      %vm497 = vcmp.lt.s32.totalorder %v495, %v496
      %v498 = vsel %vm497, %v495, %v496
      %v499 = vrot.slane %v498, 1
      %vm500 = vcmp.lt.s32.totalorder %v498, %v499
      %v501 = vsel %vm500, %v498, %v499
      %v502 = vcvt.s32.f32 %v488
      %v503 = vcvt.s32.f32 %v501
      %v504 = vmul.f32 %v502, 640.0
      %v505 = vmul.f32 %v503, 640.0
      %v508 = vrot.slane %v295, 6
      %v509 = vrot.slane %v296, 6
      %vm512 = vcmask 1041408
      %v513 = vsel %vm512, %v293, %v508
      %v514 = vsel %vm512, %v294, %v509
      %v515 = vadd.f32 %v513, %v504
      %v516 = vadd.f32 %v514, %v505
      %vm517 = vcmask 1043456
      %v518 = vsel %vm517, %v515, %v458
      %v519 = vsel %vm517, %v516, %v467
      %v520 = vsel %vm450, %v518, %v502
      %v521 = vsel %vm450, %v519, %v503
      %522 = vst [vmem:[%s154] sm:$0x3f] %v520
      %523 = vst [vmem:[%s154 + $0x8] sm:$0x3f] %v521
      %s524 = smul.u32 2, %s16
      %p525 = scmp.lt.s32.totalorder %s17, 1
      %s526 = scalar_select %p525, %s17, 1
      %p527 = scmp.lt.s32.totalorder %s524, 1
      %s528 = scalar_select %p527, %s524, 1
      %s529 = smul.addr %s526, 2
      %s530 = sadd.s32 %s528, %s529
      %s531 = smul.addr %s530, 8
      %s532 = scalar_lea.vmem %s1, %s531
      // Predicated region
      $region25: #{tpu_custom_call.1} parent=23 // pred_check
        %p533 = pneg %p72
      $region26: #{tpu_custom_call.1} parent=23 // pred_check_branch
        %535 = sbr.rel (%p533) target = $region28
      $region27: #{tpu_custom_call.1} parent=23 // pred_region
        %s536 = smul.u32 2, %s16
      $region28: #{tpu_custom_call.1} parent=23 // pred_fallthru
        _
    $region24: #{tpu_custom_call.1} parent=5 // pred_fallthru
      _
    %p537 = scmp.le.s32.totalorder 2, %s7
    // Predicated region
    $region29: #{tpu_custom_call.1} parent=5 // pred_check
      %p538 = pneg %p537
    $region30: #{tpu_custom_call.1} parent=5 // pred_check_branch
      %540 = sbr.rel (%p538) target = $region32
    $region31: #{tpu_custom_call.1} parent=5 // pred_region
      %s541 = ssub.s32 %s7, 2
      // Predicated region
      $region33: #{tpu_custom_call.1} parent=31 // pred_check
        %p542 = pneg %p78
      $region34: #{tpu_custom_call.1} parent=31 // pred_check_branch
        %544 = sbr.rel (%p542) target = $region36
      $region35: #{tpu_custom_call.1} parent=31 // pred_region
        %s545 = smul.u32 2, %s18
        %p546 = scmp.lt.s32.totalorder %s19, 1
        %s547 = scalar_select %p546, %s19, 1
        %p548 = scmp.lt.s32.totalorder %s545, 1
        %s549 = scalar_select %p548, %s545, 1
        %s550 = smul.addr %s547, 2
        %s551 = sadd.s32 %s549, %s550
        %s552 = smul.addr %s551, 8
        %s553 = scalar_lea.vmem %s1, %s552
      $region36: #{tpu_custom_call.1} parent=31 // pred_fallthru
        _
    $region32: #{tpu_custom_call.1} parent=5 // pred_fallthru
      _
  $region6: #{tpu_custom_call.1} parent=0 // loop_footer
    %s11 = sadd.s32 1, %s7
  $region7: #{tpu_custom_call.1} parent=0 // loop_footer_branch
    %6 = sbr.rel target = $region3
  $region8: #{tpu_custom_call.1} parent=0 // loop_exit
    _

</llo_original>
